<compile_context>
chip_gen: v5e
topology: v5e:2x2
jax: 0.10.0
libtpu: 0.0.40
codegen_flags: <defaults>
</compile_context>

<pallas_src>
import math

import jax
import jax.numpy as jnp
from jax import lax
from jax.experimental import pallas as pl
from jax.experimental.pallas import tpu as pltpu


# ------------------------------ Pallas kernel ------------------------------

def _linear_kernel(x_ref, w_ref, b_ref, o_ref, acc_ref):
    # x_ref: (tm, tk) rows of the flattened input
    # w_ref: (N, tk)  weight in torch nn.Linear layout (out_features, in_features)
    # b_ref: (1, N)   bias
    # o_ref: (tm, N)  output block (resident across the K axis)
    # acc_ref: (tm, N) f32 accumulator scratch
    k = pl.program_id(1)

    @pl.when(k == 0)
    def _init():
        acc_ref[...] = jnp.zeros_like(acc_ref)

    # Contract over the last dim of both operands (A @ B^T) -- no HBM-side
    # weight transpose is ever materialized.
    acc_ref[...] += lax.dot_general(
        x_ref[...], w_ref[...],
        dimension_numbers=(((1,), (1,)), ((), ())),
        preferred_element_type=jnp.float32,
    )

    @pl.when(k == pl.num_programs(1) - 1)
    def _finalize():
        o_ref[...] = (acc_ref[...] + b_ref[...].astype(jnp.float32)).astype(o_ref.dtype)


# ---------------------------- tiling heuristics -----------------------------

def _vmem_limit_bytes():
    """Per-generation scoped VMEM budget (v7x: 64 MiB total; v5e/v6e: 128 MiB)."""
    cap = 64 * 1024 * 1024
    try:
        info = pltpu.get_tpu_info()
        cap = int(getattr(info, "vmem_capacity_bytes", cap) or cap)
    except Exception:
        pass
    # Leave headroom for Mosaic-internal scratch.
    return max(24 * 1024 * 1024, min(cap - 16 * 1024 * 1024, 96 * 1024 * 1024))


def _pick_tm(M):
    """Row-tile size: 256-512 rows sit near the HBM roofline; keep >=2 blocks
    for production M so both v7x TensorCores get work."""
    for tm in (512, 384, 256, 128):
        if M % tm == 0 and M // tm >= 2:
            return tm
    if M > 512:
        return 512                      # ragged last block, masked by Pallas
    if M > 64 and M % 16 == 0:
        return M // 2                   # two full multiple-of-8 blocks
    return M                            # small / odd M: one full block


def _pick_tk(K, N, w_itemsize, budget):
    """Keep full K when the weight block fits comfortably; otherwise pick a
    128-aligned divisor of K so accumulation stays exact (no ragged K)."""
    if K * N * w_itemsize <= budget // 4:
        return K
    for tk in (4096, 2048, 1024, 512, 256, 128):
        if tk < K and K % tk == 0:
            return tk
    return K                            # no aligned divisor: keep full K


def _vmem_estimate(tm, tk, N, x_itemsize, w_itemsize):
    x_b = 2 * tm * tk * x_itemsize      # double-buffered activations
    w_b = 2 * N * tk * w_itemsize       # worst case (double-buffered weight)
    o_b = 2 * tm * N * 4
    acc = tm * N * 4
    b_b = 2 * N * 4
    return x_b + w_b + o_b + acc + b_b


# -------------------------------- wrapper ----------------------------------

def classification_subnetwork(x, weight, bias):
    """x: (tlen, bs, num_nodes, dim); weight: (num_classes, mlp_dim) (torch
    nn.Linear layout); bias: (num_classes,).  Returns (bs, tlen, num_classes)."""
    tlen, bs, num_nodes, dim = x.shape
    M = tlen * bs
    K = num_nodes * dim
    N = weight.shape[0]
    assert weight.shape[1] == K, "mlp_dim must equal num_nodes * dim"

    out_dtype = jnp.result_type(x.dtype, weight.dtype)

    # torch.reshape([bs*tlen, num_nodes*dim]): plain row-major flatten.
    x2 = x.reshape(M, K)
    b2 = bias.reshape(1, N)

    vmem_limit = _vmem_limit_bytes()
    tm = _pick_tm(M)
    tk = _pick_tk(K, N, weight.dtype.itemsize, vmem_limit)
    # Shrink the row tile (multiples of 8, ragged last block is fine) until
    # the per-step working set fits the budget.
    while _vmem_estimate(tm, tk, N, x.dtype.itemsize, weight.dtype.itemsize) > vmem_limit and tm > 8:
        tm = max(8, ((tm // 2) + 7) // 8 * 8)

    grid_m = pl.cdiv(M, tm)
    grid_k = K // tk

    cost = pl.CostEstimate(
        flops=2 * M * K * N,
        transcendentals=0,
        bytes_accessed=int(M * K * x.dtype.itemsize + K * N * weight.dtype.itemsize
                           + N * bias.dtype.itemsize + M * N * jnp.dtype(out_dtype).itemsize),
    )

    def build(single_buffer_consts):
        const_kw = dict(pipeline_mode=pl.Buffered(1)) if single_buffer_consts else {}
        # Weight only qualifies for single-buffering when its block index is
        # grid-invariant (no K tiling); the bias always is.
        w_kw = const_kw if grid_k == 1 else {}
        grid_spec = pltpu.PrefetchScalarGridSpec(
            num_scalar_prefetch=0,
            grid=(grid_m, grid_k),
            in_specs=[
                pl.BlockSpec((tm, tk), lambda i, k: (i, k)),
                pl.BlockSpec((N, tk), lambda i, k: (0, k), **w_kw),
                pl.BlockSpec((1, N), lambda i, k: (0, 0), **const_kw),
            ],
            out_specs=pl.BlockSpec((tm, N), lambda i, k: (i, 0)),
            scratch_shapes=[pltpu.VMEM((tm, N), jnp.float32)],
        )
        return pl.pallas_call(
            _linear_kernel,
            out_shape=jax.ShapeDtypeStruct((M, N), out_dtype),
            grid_spec=grid_spec,
            compiler_params=pltpu.CompilerParams(
                dimension_semantics=("parallel", "arbitrary"),
                vmem_limit_bytes=vmem_limit,
            ),
            cost_estimate=cost,
        )

    try:
        out_flat = build(True)(x2, weight, b2)
    except Exception:
        # Fallback if this JAX build rejects pl.Buffered(1) single-buffering.
        out_flat = build(False)(x2, weight, b2)

    # x.view(bs, tlen, -1): plain row-major reshape, exactly as in PyTorch.
    return out_flat.reshape(bs, tlen, N)


# ------------------------------- params ------------------------------------

def init_params(key, mlp_dim, num_classes):
    # nn.Linear default init: U(-1/sqrt(in_dim), 1/sqrt(in_dim)) for W and b.
    kw, kb = jax.random.split(key)
    bound = 1.0 / math.sqrt(mlp_dim)
    weight = jax.random.uniform(kw, (num_classes, mlp_dim), jnp.float32, -bound, bound)
    bias = jax.random.uniform(kb, (num_classes,), jnp.float32, -bound, bound)
    return weight, bias


# --------------------------------- main -------------------------------------

if __name__ == "__main__":
    key = jax.random.PRNGKey(0)
    kx, kp = jax.random.split(key)

    # Small shapes consistent with the forward: (tlen, bs, num_nodes, dim),
    # mlp_dim = num_nodes * dim.
    tlen, bs, num_nodes, dim = 8, 2, 4, 16
    mlp_dim = num_nodes * dim            # 64
    num_classes = 8

    x = jax.random.normal(kx, (tlen, bs, num_nodes, dim), jnp.float32)
    weight, bias = init_params(kp, mlp_dim, num_classes)

    out = classification_subnetwork(x, weight, bias)
    out = jax.block_until_ready(out)

    # Pure-JAX reference of the exact PyTorch semantics.
    ref = (x.reshape(tlen * bs, mlp_dim) @ weight.T + bias).reshape(bs, tlen, num_classes)

    assert out.shape == (bs, tlen, num_classes)
    assert bool(jnp.all(jnp.isfinite(out)))
    assert bool(jnp.allclose(out, ref, atol=1e-5, rtol=1e-5))
    print("KERNEL_OK")
</pallas_src>

<mosaic_0001>
module attributes {stable_mosaic.version = 11 : i64} {
  func.func @_linear_kernel(%arg0: i32, %arg1: i32, %arg2: memref<16x64xf32, #tpu.memory_space<vmem>>, %arg3: memref<8x64xf32, #tpu.memory_space<vmem>>, %arg4: memref<1x8xf32, #tpu.memory_space<vmem>>, %arg5: memref<16x8xf32, #tpu.memory_space<vmem>>, %arg6: memref<16x8xf32, #tpu.memory_space<vmem>>) attributes {dimension_semantics = [#tpu.dimension_semantics<parallel>, #tpu.dimension_semantics<arbitrary>], iteration_bounds = array<i64: 1, 1>, scalar_prefetch = 0 : i64, scratch_operands = 1 : i64, tpu.core_type = #tpu.core_type<tc>, window_params = [{transform_indices = @transform_0, window_bounds = array<i64: 16, 64>}, {pipeline_mode = #tpu.pipeline_mode<synchronous>, transform_indices = @transform_1, window_bounds = array<i64: 8, 64>}, {pipeline_mode = #tpu.pipeline_mode<synchronous>, transform_indices = @transform_2, window_bounds = array<i64: 1, 8>}, {transform_indices = @transform_3, window_bounds = array<i64: 16, 8>}]} {
    %c0_i32 = arith.constant 0 : i32
    %0 = arith.cmpi eq, %arg1, %c0_i32 : i32
    %1 = arith.extui %0 : i1 to i32
    %c0_i32_0 = arith.constant 0 : i32
    %2 = arith.cmpi ne, %1, %c0_i32_0 : i32
    scf.if %2 {
      %cst_10 = arith.constant 0.000000e+00 : f32
      %12 = vector.broadcast %cst_10 : f32 to vector<16x8xf32>
      %c0_11 = arith.constant 0 : index
      %c0_12 = arith.constant 0 : index
      %13 = vector.load %arg6[%c0_11, %c0_12] : memref<16x8xf32, #tpu.memory_space<vmem>>, vector<16x8xf32>
      tpu.vector_store %arg6[%c0_11, %c0_12], %12 {strides = array<i32>} : memref<16x8xf32, #tpu.memory_space<vmem>>, vector<16x8xf32>,
    } else {
    }
    %c0 = arith.constant 0 : index
    %c0_1 = arith.constant 0 : index
    %3 = vector.load %arg6[%c0, %c0_1] : memref<16x8xf32, #tpu.memory_space<vmem>>, vector<16x8xf32>
    %c0_2 = arith.constant 0 : index
    %c0_3 = arith.constant 0 : index
    %4 = vector.load %arg2[%c0_2, %c0_3] : memref<16x64xf32, #tpu.memory_space<vmem>>, vector<16x64xf32>
    %c0_4 = arith.constant 0 : index
    %c0_5 = arith.constant 0 : index
    %5 = vector.load %arg3[%c0_4, %c0_5] : memref<8x64xf32, #tpu.memory_space<vmem>>, vector<8x64xf32>
    %cst = arith.constant dense<0.000000e+00> : vector<16x8xf32>
    %6 = tpu.matmul %4, %5, %cst {dimension_numbers = #tpu.dot_dimension_numbers<[1], [1], [0], [0], [0, 0, 1, 0], [], []>} : vector<16x64xf32>, vector<8x64xf32>, vector<16x8xf32> -> vector<16x8xf32>
    %7 = arith.addf %3, %6 : vector<16x8xf32>
    %c0_6 = arith.constant 0 : index
    %c0_7 = arith.constant 0 : index
    %8 = vector.load %arg6[%c0_6, %c0_7] : memref<16x8xf32, #tpu.memory_space<vmem>>, vector<16x8xf32>
    tpu.vector_store %arg6[%c0_6, %c0_7], %7 {strides = array<i32>} : memref<16x8xf32, #tpu.memory_space<vmem>>, vector<16x8xf32>,
    %c0_i32_8 = arith.constant 0 : i32
    %9 = arith.cmpi eq, %arg1, %c0_i32_8 : i32
    %10 = arith.extui %9 : i1 to i32
    %c0_i32_9 = arith.constant 0 : i32
    %11 = arith.cmpi ne, %10, %c0_i32_9 : i32
    scf.if %11 {
      %c0_10 = arith.constant 0 : index
      %c0_11 = arith.constant 0 : index
      %12 = vector.load %arg6[%c0_10, %c0_11] : memref<16x8xf32, #tpu.memory_space<vmem>>, vector<16x8xf32>
      %c0_12 = arith.constant 0 : index
      %c0_13 = arith.constant 0 : index
      %13 = vector.load %arg4[%c0_12, %c0_13] : memref<1x8xf32, #tpu.memory_space<vmem>>, vector<1x8xf32>
      %14 = vector.broadcast %13 : vector<1x8xf32> to vector<16x8xf32>
      %15 = arith.addf %12, %14 : vector<16x8xf32>
      %c0_14 = arith.constant 0 : index
      %c0_15 = arith.constant 0 : index
      %16 = vector.load %arg5[%c0_14, %c0_15] : memref<16x8xf32, #tpu.memory_space<vmem>>, vector<16x8xf32>
      tpu.vector_store %arg5[%c0_14, %c0_15], %15 {strides = array<i32>} : memref<16x8xf32, #tpu.memory_space<vmem>>, vector<16x8xf32>,
    } else {
    }
    return
  }
  func.func @transform_0(%arg0: i32, %arg1: i32) -> (i32, i32) {
    %c0_i32 = arith.constant 0 : i32
    return %arg0, %arg1 : i32, i32
  }
  func.func @transform_1(%arg0: i32, %arg1: i32) -> (i32, i32) {
    %c0_i32 = arith.constant 0 : i32
    %c0_i32_0 = arith.constant 0 : i32
    return %c0_i32, %arg1 : i32, i32
  }
  func.func @transform_2(%arg0: i32, %arg1: i32) -> (i32, i32) {
    %c0_i32 = arith.constant 0 : i32
    %c0_i32_0 = arith.constant 0 : i32
    %c0_i32_1 = arith.constant 0 : i32
    return %c0_i32, %c0_i32_0 : i32, i32
  }
  func.func @transform_3(%arg0: i32, %arg1: i32) -> (i32, i32) {
    %c0_i32 = arith.constant 0 : i32
    %c0_i32_0 = arith.constant 0 : i32
    return %arg0, %c0_i32 : i32, i32
  }
}

module attributes {stable_mosaic.version = 11 : i64} {
  func.func @_linear_kernel(%arg0: i32, %arg1: i32, %arg2: memref<16x64xf32, #tpu.memory_space<vmem>>, %arg3: memref<8x64xf32, #tpu.memory_space<vmem>>, %arg4: memref<1x8xf32, #tpu.memory_space<vmem>>, %arg5: memref<16x8xf32, #tpu.memory_space<vmem>>, %arg6: memref<16x8xf32, #tpu.memory_space<vmem>>) attributes {dimension_semantics = [#tpu.dimension_semantics<parallel>, #tpu.dimension_semantics<arbitrary>], iteration_bounds = array<i64: 1, 1>, scalar_prefetch = 0 : i64, scratch_operands = 1 : i64, tpu.core_type = #tpu.core_type<tc>, window_params = [{transform_indices = @transform_0, window_bounds = array<i64: 16, 64>}, {transform_indices = @transform_1, window_bounds = array<i64: 8, 64>}, {pipeline_mode = #tpu.pipeline_mode<synchronous>, transform_indices = @transform_2, window_bounds = array<i64: 1, 8>}, {transform_indices = @transform_3, window_bounds = array<i64: 16, 8>}]} {
    %c0_i32 = arith.constant 0 : i32
    %0 = arith.cmpi eq, %arg1, %c0_i32 : i32
    %1 = arith.extui %0 : i1 to i32
    %c0_i32_0 = arith.constant 0 : i32
    %2 = arith.cmpi ne, %1, %c0_i32_0 : i32
    scf.if %2 {
      %cst_10 = arith.constant 0.000000e+00 : f32
      %12 = vector.broadcast %cst_10 : f32 to vector<16x8xf32>
      %c0_11 = arith.constant 0 : index
      %c0_12 = arith.constant 0 : index
      %13 = vector.load %arg6[%c0_11, %c0_12] : memref<16x8xf32, #tpu.memory_space<vmem>>, vector<16x8xf32>
      tpu.vector_store %arg6[%c0_11, %c0_12], %12 {strides = array<i32>} : memref<16x8xf32, #tpu.memory_space<vmem>>, vector<16x8xf32>,
    } else {
    }
    %c0 = arith.constant 0 : index
    %c0_1 = arith.constant 0 : index
    %3 = vector.load %arg6[%c0, %c0_1] : memref<16x8xf32, #tpu.memory_space<vmem>>, vector<16x8xf32>
    %c0_2 = arith.constant 0 : index
    %c0_3 = arith.constant 0 : index
    %4 = vector.load %arg2[%c0_2, %c0_3] : memref<16x64xf32, #tpu.memory_space<vmem>>, vector<16x64xf32>
    %c0_4 = arith.constant 0 : index
    %c0_5 = arith.constant 0 : index
    %5 = vector.load %arg3[%c0_4, %c0_5] : memref<8x64xf32, #tpu.memory_space<vmem>>, vector<8x64xf32>
    %cst = arith.constant dense<0.000000e+00> : vector<16x8xf32>
    %6 = tpu.matmul %4, %5, %cst {dimension_numbers = #tpu.dot_dimension_numbers<[1], [1], [0], [0], [0, 0, 1, 0], [], []>} : vector<16x64xf32>, vector<8x64xf32>, vector<16x8xf32> -> vector<16x8xf32>
    %7 = arith.addf %3, %6 : vector<16x8xf32>
    %c0_6 = arith.constant 0 : index
    %c0_7 = arith.constant 0 : index
    %8 = vector.load %arg6[%c0_6, %c0_7] : memref<16x8xf32, #tpu.memory_space<vmem>>, vector<16x8xf32>
    tpu.vector_store %arg6[%c0_6, %c0_7], %7 {strides = array<i32>} : memref<16x8xf32, #tpu.memory_space<vmem>>, vector<16x8xf32>,
    %c0_i32_8 = arith.constant 0 : i32
    %9 = arith.cmpi eq, %arg1, %c0_i32_8 : i32
    %10 = arith.extui %9 : i1 to i32
    %c0_i32_9 = arith.constant 0 : i32
    %11 = arith.cmpi ne, %10, %c0_i32_9 : i32
    scf.if %11 {
      %c0_10 = arith.constant 0 : index
      %c0_11 = arith.constant 0 : index
      %12 = vector.load %arg6[%c0_10, %c0_11] : memref<16x8xf32, #tpu.memory_space<vmem>>, vector<16x8xf32>
      %c0_12 = arith.constant 0 : index
      %c0_13 = arith.constant 0 : index
      %13 = vector.load %arg4[%c0_12, %c0_13] : memref<1x8xf32, #tpu.memory_space<vmem>>, vector<1x8xf32>
      %14 = vector.broadcast %13 : vector<1x8xf32> to vector<16x8xf32>
      %15 = arith.addf %12, %14 : vector<16x8xf32>
      %c0_14 = arith.constant 0 : index
      %c0_15 = arith.constant 0 : index
      %16 = vector.load %arg5[%c0_14, %c0_15] : memref<16x8xf32, #tpu.memory_space<vmem>>, vector<16x8xf32>
      tpu.vector_store %arg5[%c0_14, %c0_15], %15 {strides = array<i32>} : memref<16x8xf32, #tpu.memory_space<vmem>>, vector<16x8xf32>,
    } else {
    }
    return
  }
  func.func @transform_0(%arg0: i32, %arg1: i32) -> (i32, i32) {
    %c0_i32 = arith.constant 0 : i32
    return %arg0, %arg1 : i32, i32
  }
  func.func @transform_1(%arg0: i32, %arg1: i32) -> (i32, i32) {
    %c0_i32 = arith.constant 0 : i32
    %c0_i32_0 = arith.constant 0 : i32
    return %c0_i32, %arg1 : i32, i32
  }
  func.func @transform_2(%arg0: i32, %arg1: i32) -> (i32, i32) {
    %c0_i32 = arith.constant 0 : i32
    %c0_i32_0 = arith.constant 0 : i32
    %c0_i32_1 = arith.constant 0 : i32
    return %c0_i32, %c0_i32_0 : i32, i32
  }
  func.func @transform_3(%arg0: i32, %arg1: i32) -> (i32, i32) {
    %c0_i32 = arith.constant 0 : i32
    %c0_i32_0 = arith.constant 0 : i32
    return %arg0, %c0_i32 : i32, i32
  }
}

</mosaic_0001>

<llo_original>
// kernel: tpu_custom_call.1
$region0: #{tpu_custom_call.1}
  #allocation0 [shape = 'u32[]', space=smem, size = 0x4, offset = 0x4, fixed_abs, tag = 'smem constant byte address 0x4 - core index']
  #allocation1 [shape = 'u32[72,128]{1,0:T(1,128)}', space=vmem, size = 0x9000, scoped, tag = 'internal scratch']
  #allocation2 [shape = 'f32[16,8]{1,0:T(8,128)}', space=vmem, size = 0x2000, scoped, tag = 'scratch operand']
  %s0 = inlined_call_operand.hbm [shape: f32[16,64], index: 0, kind: input, shape index: {}]
  %s1 = inlined_call_operand.hbm [shape: f32[8,64], index: 1, kind: input, shape index: {}]
  %s2 = inlined_call_operand.vmem [shape: f32[1,8], index: 2, kind: input, shape index: {}]
  %s3 = inlined_call_operand.vmem [shape: f32[16,8], index: 3, kind: output, shape index: {}]
  %s4 = sld [smem:[#allocation0]]
  $region38: #{tpu_custom_call.1} parent=0
    _
  %s6 = ssub.s32 1, %s4
  %s7 = scalar_select 0, %s6, %s4
  $region1: #{tpu_custom_call.1} parent=0
    #allocation3 [shape = 'u8[8192]{0}', space=vmem, size = 0x2000, scoped, tag = 'input window, operand 0, single buffered']
    #allocation4 [shape = 's32[1]{0}', space=sflag, size = 0x4, scoped, tag = 'scoped memory for tpu_custom_call.1']
    #allocation5 [shape = 'u8[4096]{0}', space=vmem, size = 0x1000, scoped, tag = 'input window, operand 1, single buffered']
    #allocation6 [shape = 's32[1]{0}', space=sflag, size = 0x4, scoped, tag = 'scoped memory for tpu_custom_call.1']
    %8 = vsyncpa [#allocation4], 0
    %9 = vsyncpa [#allocation6], 0
    // Predicated region
    $region2: #{tpu_custom_call.1} parent=1 // pred_check
      _
    $region3: #{tpu_custom_call.1} parent=1 // pred_check_branch
      %11 = sbr.rel (0) target = $region5
    $region4: #{tpu_custom_call.1} parent=1 // pred_region
      %13 = vsyncadd [#allocation4], 0
      %s14 = sshll.u32 %s0, 4
      %s15 = int_to_ptr.hbm [resolvable:$true] %s14
      %s16 = sshll.u32 [#allocation3], 4
      %s17 = int_to_ptr.vmem [resolvable:$true] %s16
      %22 = dma.hbm_to_vmem [thread:$0]  %s15, 256, %s17, [#allocation4], 128, 128, 8
    $region5: #{tpu_custom_call.1} parent=1 // pred_fallthru
      _
    // Predicated region
    $region6: #{tpu_custom_call.1} parent=1 // pred_check
      _
    $region7: #{tpu_custom_call.1} parent=1 // pred_check_branch
      %24 = sbr.rel (0) target = $region9
    $region8: #{tpu_custom_call.1} parent=1 // pred_region
      %26 = vsyncadd [#allocation6], 0
      %s28 = sshll.u32 %s1, 4
      %s29 = int_to_ptr.hbm [resolvable:$true] %s28
      %s30 = sshll.u32 [#allocation5], 4
      %s31 = int_to_ptr.vmem [resolvable:$true] %s30
      %33 = dma.hbm_to_vmem [thread:$0]  %s29, 128, %s31, [#allocation6]
    $region9: #{tpu_custom_call.1} parent=1 // pred_fallthru
      _
    // Predicated region
    $region10: #{tpu_custom_call.1} parent=1 // pred_check
      _
    $region11: #{tpu_custom_call.1} parent=1 // pred_check_branch
      %35 = sbr.rel (0) target = $region13
    $region12: #{tpu_custom_call.1} parent=1 // pred_region
      _
    $region13: #{tpu_custom_call.1} parent=1 // pred_fallthru
      _
    // Predicated region
    $region14: #{tpu_custom_call.1} parent=1 // pred_check
      _
    $region15: #{tpu_custom_call.1} parent=1 // pred_check_branch
      %37 = sbr.rel (0) target = $region17
    $region16: #{tpu_custom_call.1} parent=1 // pred_region
      %39 = dma.done [#allocation4], 256
    $region17: #{tpu_custom_call.1} parent=1 // pred_fallthru
      _
    // Predicated region
    $region18: #{tpu_custom_call.1} parent=1 // pred_check
      _
    $region19: #{tpu_custom_call.1} parent=1 // pred_check_branch
      %41 = sbr.rel (0) target = $region21
    $region20: #{tpu_custom_call.1} parent=1 // pred_region
      %43 = dma.done [#allocation6], 128
    $region21: #{tpu_custom_call.1} parent=1 // pred_fallthru
      _
    %p44 = scmp.eq.s32.totalorder 0, 0
    // Predicated region
    $region22: #{tpu_custom_call.1} parent=1 // pred_check
      %p45 = pneg %p44
    $region23: #{tpu_custom_call.1} parent=1 // pred_check_branch
      %47 = sbr.rel (%p45) target = $region25
    $region24: #{tpu_custom_call.1} parent=1 // pred_region
      %vm48 = vcmask 64512
      %49 = vst.msk [vmem:[#allocation2] sm:$0xff] %vm48, 0.0
      %50 = vst.msk [vmem:[#allocation2 + $0x8] sm:$0xff] %vm48, 0.0
    $region25: #{tpu_custom_call.1} parent=1 // pred_fallthru
      _
    %v51 = vld [vmem:[#allocation2] sm:$0xff]
    %v52 = vld [vmem:[#allocation2 + $0x8] sm:$0xff]
    %v53 = vld [vmem:[#allocation3] sm:$0xff]
    %v54 = vld [vmem:[#allocation3 + $0x8] sm:$0xff]
    %v55 = vld [vmem:[#allocation5] sm:$0xff]
    %vm56 = vcmask 523264
    %v58 = vsel %vm56, %v53, 0
    %v61 = vsel %vm56, %v54, 0
    %v64 = vsel %vm56, %v55, 0
    %66 = vmatpush.xpose.msra.mxu0 0.0
    %67 = vmatpush.xpose.msra.mxu0 0.0
    %68 = vmatpush.xpose.msra.mxu0 0.0
    %69 = vmatpush.xpose.msra.mxu0 0.0
    %70 = vmatpush.xpose.msra.mxu0 0.0
    %71 = vmatpush.xpose.msra.mxu0 0.0
    %72 = vmatpush.xpose.msra.mxu0 0.0
    %73 = vmatpush.xpose.msra.mxu0 0.0
    %74 = vmatpush.xpose.msra.mxu0 0.0
    %75 = vmatpush.xpose.msra.mxu0 0.0
    %76 = vmatpush.xpose.msra.mxu0 0.0
    %77 = vmatpush.xpose.msra.mxu0 0.0
    %78 = vmatpush.xpose.msra.mxu0 0.0
    %79 = vmatpush.xpose.msra.mxu0 0.0
    %80 = vmatpush.xpose.msra.mxu0 0.0
    %81 = vmatpush.xpose.msra.mxu0 %v64
    %82 = vmatmul.f32.gmra.mxu0 %v58
    %v83 = vpop.f32.mrf.mxu0
    %v84 = vadd.f32 0.0, %v83
    %85 = vmatmul.f32.gmra.mxu0 %v61
    %v86 = vpop.f32.mrf.mxu0
    %v87 = vadd.f32 0.0, %v86
    %88 = vdwg.mxu0
    %v89 = vadd.f32 %v51, %v84
    %v90 = vadd.f32 %v52, %v87
    %vm91 = vcmask 64512
    %92 = vst.msk [vmem:[#allocation2] sm:$0xff] %vm91, %v89
    %93 = vst.msk [vmem:[#allocation2 + $0x8] sm:$0xff] %vm91, %v90
    // Predicated region
    $region26: #{tpu_custom_call.1} parent=1 // pred_check
      %p94 = pneg %p44
    $region27: #{tpu_custom_call.1} parent=1 // pred_check_branch
      %96 = sbr.rel (%p94) target = $region29
    $region28: #{tpu_custom_call.1} parent=1 // pred_region
      %v97 = vld [vmem:[#allocation2] sm:$0xff]
      %v98 = vld [vmem:[#allocation2 + $0x8] sm:$0xff]
      %v99 = vld [vmem:[%s2] sm:$0x1]
      %v101 = vperm.slane %v99, 0
      %v103 = vadd.f32 %v97, %v101
      %v104 = vadd.f32 %v98, %v101
      %105 = vst.msk [vmem:[%s3] sm:$0xff] %vm91, %v103
      %106 = vst.msk [vmem:[%s3 + $0x8] sm:$0xff] %vm91, %v104
    $region29: #{tpu_custom_call.1} parent=1 // pred_fallthru
      _
    // Predicated region
    $region30: #{tpu_custom_call.1} parent=1 // pred_check
      _
    $region31: #{tpu_custom_call.1} parent=1 // pred_check_branch
      %108 = sbr.rel (0) target = $region33
    $region32: #{tpu_custom_call.1} parent=1 // pred_region
      _
    $region33: #{tpu_custom_call.1} parent=1 // pred_fallthru
      _
    // Predicated region
    $region34: #{tpu_custom_call.1} parent=1 // pred_check
      _
    $region35: #{tpu_custom_call.1} parent=1 // pred_check_branch
      %110 = sbr.rel (0) target = $region37
    $region36: #{tpu_custom_call.1} parent=1 // pred_region
      _
    $region37: #{tpu_custom_call.1} parent=1 // pred_fallthru
      _
    %111 = vsyncpa [#allocation4], 1
    %112 = vsyncpa [#allocation6], 1

// kernel: tpu_custom_call.1
$region0: #{tpu_custom_call.1}
  #allocation0 [shape = 'u32[]', space=smem, size = 0x4, offset = 0x4, fixed_abs, tag = 'smem constant byte address 0x4 - core index']
  #allocation1 [shape = 'u32[72,128]{1,0:T(1,128)}', space=vmem, size = 0x9000, scoped, tag = 'internal scratch']
  #allocation2 [shape = 'f32[16,8]{1,0:T(8,128)}', space=vmem, size = 0x2000, scoped, tag = 'scratch operand']
  %s0 = inlined_call_operand.hbm [shape: f32[16,64], index: 0, kind: input, shape index: {}]
  %s1 = inlined_call_operand.hbm [shape: f32[8,64], index: 1, kind: input, shape index: {}]
  %s2 = inlined_call_operand.vmem [shape: f32[1,8], index: 2, kind: input, shape index: {}]
  %s3 = inlined_call_operand.vmem [shape: f32[16,8], index: 3, kind: output, shape index: {}]
  %s4 = sld [smem:[#allocation0]]
  $region38: #{tpu_custom_call.1} parent=0
    _
  %s6 = ssub.s32 1, %s4
  %s7 = scalar_select 0, %s6, %s4
  $region1: #{tpu_custom_call.1} parent=0
    #allocation3 [shape = 'u8[8192]{0}', space=vmem, size = 0x2000, scoped, tag = 'input window, operand 0, single buffered']
    #allocation4 [shape = 's32[1]{0}', space=sflag, size = 0x4, scoped, tag = 'scoped memory for tpu_custom_call.1']
    #allocation5 [shape = 'u8[4096]{0}', space=vmem, size = 0x1000, scoped, tag = 'input window, operand 1, single buffered']
    #allocation6 [shape = 's32[1]{0}', space=sflag, size = 0x4, scoped, tag = 'scoped memory for tpu_custom_call.1']
    %8 = vsyncpa [#allocation4], 0
    %9 = vsyncpa [#allocation6], 0
    // Predicated region
    $region2: #{tpu_custom_call.1} parent=1 // pred_check
      _
    $region3: #{tpu_custom_call.1} parent=1 // pred_check_branch
      %11 = sbr.rel (0) target = $region5
    $region4: #{tpu_custom_call.1} parent=1 // pred_region
      %13 = vsyncadd [#allocation4], 0
      %s14 = sshll.u32 %s0, 4
      %s15 = int_to_ptr.hbm [resolvable:$true] %s14
      %s16 = sshll.u32 [#allocation3], 4
      %s17 = int_to_ptr.vmem [resolvable:$true] %s16
      %22 = dma.hbm_to_vmem [thread:$0]  %s15, 256, %s17, [#allocation4], 128, 128, 8
    $region5: #{tpu_custom_call.1} parent=1 // pred_fallthru
      _
    // Predicated region
    $region6: #{tpu_custom_call.1} parent=1 // pred_check
      _
    $region7: #{tpu_custom_call.1} parent=1 // pred_check_branch
      %24 = sbr.rel (0) target = $region9
    $region8: #{tpu_custom_call.1} parent=1 // pred_region
      %26 = vsyncadd [#allocation6], 0
      %s28 = sshll.u32 %s1, 4
      %s29 = int_to_ptr.hbm [resolvable:$true] %s28
      %s30 = sshll.u32 [#allocation5], 4
      %s31 = int_to_ptr.vmem [resolvable:$true] %s30
      %33 = dma.hbm_to_vmem [thread:$0]  %s29, 128, %s31, [#allocation6]
    $region9: #{tpu_custom_call.1} parent=1 // pred_fallthru
      _
    // Predicated region
    $region10: #{tpu_custom_call.1} parent=1 // pred_check
      _
    $region11: #{tpu_custom_call.1} parent=1 // pred_check_branch
      %35 = sbr.rel (0) target = $region13
    $region12: #{tpu_custom_call.1} parent=1 // pred_region
      _
    $region13: #{tpu_custom_call.1} parent=1 // pred_fallthru
      _
    // Predicated region
    $region14: #{tpu_custom_call.1} parent=1 // pred_check
      _
    $region15: #{tpu_custom_call.1} parent=1 // pred_check_branch
      %37 = sbr.rel (0) target = $region17
    $region16: #{tpu_custom_call.1} parent=1 // pred_region
      %39 = dma.done [#allocation4], 256
    $region17: #{tpu_custom_call.1} parent=1 // pred_fallthru
      _
    // Predicated region
    $region18: #{tpu_custom_call.1} parent=1 // pred_check
      _
    $region19: #{tpu_custom_call.1} parent=1 // pred_check_branch
      %41 = sbr.rel (0) target = $region21
    $region20: #{tpu_custom_call.1} parent=1 // pred_region
      %43 = dma.done [#allocation6], 128
    $region21: #{tpu_custom_call.1} parent=1 // pred_fallthru
      _
    %p44 = scmp.eq.s32.totalorder 0, 0
    // Predicated region
    $region22: #{tpu_custom_call.1} parent=1 // pred_check
      %p45 = pneg %p44
    $region23: #{tpu_custom_call.1} parent=1 // pred_check_branch
      %47 = sbr.rel (%p45) target = $region25
    $region24: #{tpu_custom_call.1} parent=1 // pred_region
      %vm48 = vcmask 64512
      %49 = vst.msk [vmem:[#allocation2] sm:$0xff] %vm48, 0.0
      %50 = vst.msk [vmem:[#allocation2 + $0x8] sm:$0xff] %vm48, 0.0
    $region25: #{tpu_custom_call.1} parent=1 // pred_fallthru
      _
    %v51 = vld [vmem:[#allocation2] sm:$0xff]
    %v52 = vld [vmem:[#allocation2 + $0x8] sm:$0xff]
    %v53 = vld [vmem:[#allocation3] sm:$0xff]
    %v54 = vld [vmem:[#allocation3 + $0x8] sm:$0xff]
    %v55 = vld [vmem:[#allocation5] sm:$0xff]
    %vm56 = vcmask 523264
    %v58 = vsel %vm56, %v53, 0
    %v61 = vsel %vm56, %v54, 0
    %v64 = vsel %vm56, %v55, 0
    %66 = vmatpush.xpose.msra.mxu0 0.0
    %67 = vmatpush.xpose.msra.mxu0 0.0
    %68 = vmatpush.xpose.msra.mxu0 0.0
    %69 = vmatpush.xpose.msra.mxu0 0.0
    %70 = vmatpush.xpose.msra.mxu0 0.0
    %71 = vmatpush.xpose.msra.mxu0 0.0
    %72 = vmatpush.xpose.msra.mxu0 0.0
    %73 = vmatpush.xpose.msra.mxu0 0.0
    %74 = vmatpush.xpose.msra.mxu0 0.0
    %75 = vmatpush.xpose.msra.mxu0 0.0
    %76 = vmatpush.xpose.msra.mxu0 0.0
    %77 = vmatpush.xpose.msra.mxu0 0.0
    %78 = vmatpush.xpose.msra.mxu0 0.0
    %79 = vmatpush.xpose.msra.mxu0 0.0
    %80 = vmatpush.xpose.msra.mxu0 0.0
    %81 = vmatpush.xpose.msra.mxu0 %v64
    %82 = vmatmul.f32.gmra.mxu0 %v58
    %v83 = vpop.f32.mrf.mxu0
    %v84 = vadd.f32 0.0, %v83
    %85 = vmatmul.f32.gmra.mxu0 %v61
    %v86 = vpop.f32.mrf.mxu0
    %v87 = vadd.f32 0.0, %v86
    %88 = vdwg.mxu0
    %v89 = vadd.f32 %v51, %v84
    %v90 = vadd.f32 %v52, %v87
    %vm91 = vcmask 64512
    %92 = vst.msk [vmem:[#allocation2] sm:$0xff] %vm91, %v89
    %93 = vst.msk [vmem:[#allocation2 + $0x8] sm:$0xff] %vm91, %v90
    // Predicated region
    $region26: #{tpu_custom_call.1} parent=1 // pred_check
      %p94 = pneg %p44
    $region27: #{tpu_custom_call.1} parent=1 // pred_check_branch
      %96 = sbr.rel (%p94) target = $region29
    $region28: #{tpu_custom_call.1} parent=1 // pred_region
      %v97 = vld [vmem:[#allocation2] sm:$0xff]
      %v98 = vld [vmem:[#allocation2 + $0x8] sm:$0xff]
      %v99 = vld [vmem:[%s2] sm:$0x1]
      %v101 = vperm.slane %v99, 0
      %v103 = vadd.f32 %v97, %v101
      %v104 = vadd.f32 %v98, %v101
      %105 = vst.msk [vmem:[%s3] sm:$0xff] %vm91, %v103
      %106 = vst.msk [vmem:[%s3 + $0x8] sm:$0xff] %vm91, %v104
    $region29: #{tpu_custom_call.1} parent=1 // pred_fallthru
      _
    // Predicated region
    $region30: #{tpu_custom_call.1} parent=1 // pred_check
      _
    $region31: #{tpu_custom_call.1} parent=1 // pred_check_branch
      %108 = sbr.rel (0) target = $region33
    $region32: #{tpu_custom_call.1} parent=1 // pred_region
      _
    $region33: #{tpu_custom_call.1} parent=1 // pred_fallthru
      _
    // Predicated region
    $region34: #{tpu_custom_call.1} parent=1 // pred_check
      _
    $region35: #{tpu_custom_call.1} parent=1 // pred_check_branch
      %110 = sbr.rel (0) target = $region37
    $region36: #{tpu_custom_call.1} parent=1 // pred_region
      _
    $region37: #{tpu_custom_call.1} parent=1 // pred_fallthru
      _
    %111 = vsyncpa [#allocation4], 1
    %112 = vsyncpa [#allocation6], 1

</llo_original>
